<compile_context>
chip_gen: v5e
topology: v5e:2x2
jax: 0.10.0
libtpu: 0.0.40
codegen_flags: <defaults>
</compile_context>

<pallas_src>
import math

import numpy as np
import jax
import jax.numpy as jnp
from jax.experimental import pallas as pl
from jax.experimental.pallas import tpu as pltpu


_SEL_BYTES_CAP = 4 << 20            # cap on the resident selection matrix
_TARGET_OUT_BLOCK_BYTES = 2 << 20   # ~2 MiB output blocks (~85%+ HBM roofline)


def _upsample2x_rows_kernel(sel_ref, x_ref, o_ref):
    """out[r, c] = sum_d x[r, d] * sel[d, c].

    sel is a 0/1 selection matrix with exactly one 1.0 per output column
    (nearest-neighbor duplication), so every output element is a single
    1.0 * x product accumulated in f32 -> exact.
    """
    o_ref[...] = jnp.dot(
        x_ref[...], sel_ref[...], preferred_element_type=jnp.float32
    ).astype(o_ref.dtype)


def _choose_layout(n, ch, h, w, itemsize):
    """Pick flat-row width L (lane-dense, K = L/4 as deep as the sel-matrix
    VMEM cap allows) and a row tile TR (multiple of 8, ~2 MiB output block)."""
    total = n * ch * h * w
    l = None
    for m in (512, 256, 128):                       # prefer K = L/4 >= 128
        cand = math.lcm(4 * w, m)
        if (cand // 4) * cand * itemsize <= _SEL_BYTES_CAP:
            l = cand
            break
    if l is None:
        return None                                  # huge W: plain-JAX fallback
    chunk = l // 4
    rows = -(-total // chunk)                        # ceil div
    tr_target = max(8, (_TARGET_OUT_BLOCK_BYTES // (itemsize * l)) // 8 * 8)
    if rows <= tr_target:
        return l, chunk, rows, rows, rows            # single full-extent block
    tr = None
    for cand_tr in range(tr_target, 7, -8):          # largest mult-of-8 divisor
        if rows % cand_tr == 0:
            tr = cand_tr
            break
    if tr is None:                                   # no clean divisor -> pad
        tr = tr_target
        padded_rows = -(-rows // tr) * tr
    else:
        padded_rows = rows
    return l, chunk, rows, tr, padded_rows


@jax.jit
def nearest_upsample_2x(x):
    """x: (N, C, H, W) -> (N, C, 2H, 2W), nearest-neighbor 2x upsample."""
    n, ch, h, w = x.shape
    itemsize = jnp.dtype(x.dtype).itemsize
    total = n * ch * h * w

    layout = _choose_layout(n, ch, h, w, itemsize)
    if layout is None:
        # TODO(synk): very large W makes the (L/4, L) selection matrix exceed
        # the VMEM budget; fall back to plain JAX for those shapes.
        return jnp.repeat(jnp.repeat(x, 2, axis=2), 2, axis=3)
    l, chunk, rows, tr, padded_rows = layout

    # Flat-row view: each input chunk of L/4 contiguous elements (p = L/(4W)
    # image rows, which may legitimately cross channel boundaries) maps to L
    # contiguous output elements, so the kernel writes the output in its final
    # NCHW memory order with full-128-lane stores.
    x_flat = x.reshape(-1)
    padded_total = padded_rows * chunk
    if padded_total != total:
        x_flat = jnp.pad(x_flat, (0, padded_total - total))
    x2 = x_flat.reshape(padded_rows, chunk)

    # 0/1 selection matrix:  out lane c  <-  chunk element
    #   m(c) = W*(c // (4W)) + (c % (2W)) // 2
    # Built once at trace time (numpy -> jaxpr constant), VMEM-resident in the
    # kernel (its block index never changes across grid steps).
    d = np.arange(chunk, dtype=np.int64)[:, None]
    c = np.arange(l, dtype=np.int64)[None, :]
    sel_np = d == (w * (c // (4 * w)) + (c % (2 * w)) // 2)
    sel = jnp.asarray(sel_np, dtype=x.dtype)

    grid = padded_rows // tr
    out2 = pl.pallas_call(
        _upsample2x_rows_kernel,
        out_shape=jax.ShapeDtypeStruct((padded_rows, l), x.dtype),
        grid=(grid,),
        in_specs=[
            pl.BlockSpec((chunk, l), lambda i: (0, 0)),    # sel: resident
            pl.BlockSpec((tr, chunk), lambda i: (i, 0)),   # input row tile
        ],
        out_specs=pl.BlockSpec((tr, l), lambda i: (i, 0)),
        compiler_params=pltpu.CompilerParams(
            dimension_semantics=("parallel",)),
    )(sel, x2)

    if padded_total != total:
        return out2.reshape(-1)[: total * 4].reshape(n, ch, 2 * h, 2 * w)
    return out2.reshape(n, ch, 2 * h, 2 * w)


class WrapFunction:
    """JAX analogue of mmcv's WrapFunction: forward(*args) = wrapped_function(*args)."""

    def __init__(self, wrapped_function):
        self.wrapped_function = wrapped_function

    def __call__(self, *args, **kwargs):
        return self.wrapped_function(*args, **kwargs)


if __name__ == "__main__":
    key = jax.random.PRNGKey(0)
    x = jax.random.uniform(key, (2, 4, 16, 16), dtype=jnp.float32)

    model = WrapFunction(nearest_upsample_2x)
    y = jax.block_until_ready(model(x))

    # Plain-JAX reference for nearest 2x upsample (sanity check, outside kernel).
    y_ref = jnp.repeat(jnp.repeat(x, 2, axis=2), 2, axis=3)
    assert y.shape == (2, 4, 32, 32), y.shape
    assert jnp.allclose(y, y_ref), "kernel output does not match reference"
    print("KERNEL_OK")
</pallas_src>

<mosaic_0001>
module attributes {stable_mosaic.version = 11 : i64} {
  func.func @_upsample2x_rows_kernel(%arg0: i32, %arg1: memref<128x512xf32, #tpu.memory_space<vmem>>, %arg2: memref<16x128xf32, #tpu.memory_space<vmem>>, %arg3: memref<16x512xf32, #tpu.memory_space<vmem>>) attributes {dimension_semantics = [#tpu.dimension_semantics<parallel>], iteration_bounds = array<i64: 1>, scalar_prefetch = 0 : i64, scratch_operands = 0 : i64, tpu.core_type = #tpu.core_type<tc>, window_params = [{pipeline_mode = #tpu.pipeline_mode<synchronous>, transform_indices = @transform_0, window_bounds = array<i64: 128, 512>}, {transform_indices = @transform_1, window_bounds = array<i64: 16, 128>}, {transform_indices = @transform_2, window_bounds = array<i64: 16, 512>}]} {
    %c0 = arith.constant 0 : index
    %c0_0 = arith.constant 0 : index
    %0 = vector.load %arg2[%c0, %c0_0] : memref<16x128xf32, #tpu.memory_space<vmem>>, vector<16x128xf32>
    %c0_1 = arith.constant 0 : index
    %c0_2 = arith.constant 0 : index
    %1 = vector.load %arg1[%c0_1, %c0_2] : memref<128x512xf32, #tpu.memory_space<vmem>>, vector<128x512xf32>
    %cst = arith.constant dense<0.000000e+00> : vector<16x512xf32>
    %2 = tpu.matmul %0, %1, %cst {dimension_numbers = #tpu.dot_dimension_numbers<[1], [0], [0], [1], [0, 0, 1, 1], [], []>} : vector<16x128xf32>, vector<128x512xf32>, vector<16x512xf32> -> vector<16x512xf32>
    %c0_3 = arith.constant 0 : index
    %c0_4 = arith.constant 0 : index
    %3 = vector.load %arg3[%c0_3, %c0_4] : memref<16x512xf32, #tpu.memory_space<vmem>>, vector<16x512xf32>
    tpu.vector_store %arg3[%c0_3, %c0_4], %2 {strides = array<i32>} : memref<16x512xf32, #tpu.memory_space<vmem>>, vector<16x512xf32>,
    return
  }
  func.func @transform_0(%arg0: i32) -> (i32, i32) {
    %c0_i32 = arith.constant 0 : i32
    %c0_i32_0 = arith.constant 0 : i32
    %c0_i32_1 = arith.constant 0 : i32
    return %c0_i32, %c0_i32_0 : i32, i32
  }
  func.func @transform_1(%arg0: i32) -> (i32, i32) {
    %c0_i32 = arith.constant 0 : i32
    %c0_i32_0 = arith.constant 0 : i32
    return %arg0, %c0_i32 : i32, i32
  }
  func.func @transform_2(%arg0: i32) -> (i32, i32) {
    %c0_i32 = arith.constant 0 : i32
    %c0_i32_0 = arith.constant 0 : i32
    return %arg0, %c0_i32 : i32, i32
  }
}

</mosaic_0001>

<llo_original>
// kernel: nearest_upsample_2x.1
$region0: #{nearest_upsample_2x.1}
  #allocation0 [shape = 'u32[]', space=smem, size = 0x4, offset = 0x4, fixed_abs, tag = 'smem constant byte address 0x4 - core index']
  #allocation1 [shape = 'u32[72,128]{1,0:T(1,128)}', space=vmem, size = 0x9000, scoped, tag = 'internal scratch']
  %s0 = inlined_call_operand.hbm [shape: f32[128,512], index: 0, kind: input, shape index: {}]
  %s1 = inlined_call_operand.vmem [shape: f32[16,128], index: 1, kind: input, shape index: {}]
  %s2 = inlined_call_operand.vmem [shape: f32[16,512], index: 2, kind: output, shape index: {}]
  %s3 = sld [smem:[#allocation0]]
  $region22: #{nearest_upsample_2x.1} parent=0
    _
  %s5 = ssub.s32 1, %s3
  %s6 = scalar_select 0, %s5, %s3
  $region1: #{nearest_upsample_2x.1} parent=0
    #allocation2 [shape = 'u8[262144]{0}', space=vmem, size = 0x40000, scoped, tag = 'input window, operand 0, single buffered']
    #allocation3 [shape = 's32[1]{0}', space=sflag, size = 0x4, scoped, tag = 'scoped memory for nearest_upsample_2x.1']
    %7 = vsyncpa [#allocation3], 0
    // Predicated region
    $region2: #{nearest_upsample_2x.1} parent=1 // pred_check
      _
    $region3: #{nearest_upsample_2x.1} parent=1 // pred_check_branch
      %9 = sbr.rel (0) target = $region5
    $region4: #{nearest_upsample_2x.1} parent=1 // pred_region
      %11 = vsyncadd [#allocation3], 0
      %s12 = sshll.u32 %s0, 4
      %s13 = int_to_ptr.hbm [resolvable:$true] %s12
      %s14 = sshll.u32 [#allocation2], 4
      %s15 = int_to_ptr.vmem [resolvable:$true] %s14
      %20 = dma.hbm_to_vmem [thread:$0]  %s13, 8192, %s15, [#allocation3], 512, 512, 32
    $region5: #{nearest_upsample_2x.1} parent=1 // pred_fallthru
      _
    // Predicated region
    $region6: #{nearest_upsample_2x.1} parent=1 // pred_check
      _
    $region7: #{nearest_upsample_2x.1} parent=1 // pred_check_branch
      %22 = sbr.rel (0) target = $region9
    $region8: #{nearest_upsample_2x.1} parent=1 // pred_region
      _
    $region9: #{nearest_upsample_2x.1} parent=1 // pred_fallthru
      _
    // Predicated region
    $region10: #{nearest_upsample_2x.1} parent=1 // pred_check
      _
    $region11: #{nearest_upsample_2x.1} parent=1 // pred_check_branch
      %24 = sbr.rel (0) target = $region13
    $region12: #{nearest_upsample_2x.1} parent=1 // pred_region
      %26 = dma.done [#allocation3], 8192
    $region13: #{nearest_upsample_2x.1} parent=1 // pred_fallthru
      _
    %v27 = vld [vmem:[%s1] sm:$0xff]
    %v28 = vld [vmem:[%s1 + $0x8] sm:$0xff]
    %v29 = vld [vmem:[#allocation2] sm:$0xff]
    %v30 = vld [vmem:[#allocation2 + $0x8] sm:$0xff]
    %v31 = vld [vmem:[#allocation2 + $0x10] sm:$0xff]
    %v32 = vld [vmem:[#allocation2 + $0x18] sm:$0xff]
    %v33 = vld [vmem:[#allocation2 + $0x20] sm:$0xff]
    %v34 = vld [vmem:[#allocation2 + $0x28] sm:$0xff]
    %v35 = vld [vmem:[#allocation2 + $0x30] sm:$0xff]
    %v36 = vld [vmem:[#allocation2 + $0x38] sm:$0xff]
    %v37 = vld [vmem:[#allocation2 + $0x40] sm:$0xff]
    %v38 = vld [vmem:[#allocation2 + $0x48] sm:$0xff]
    %v39 = vld [vmem:[#allocation2 + $0x50] sm:$0xff]
    %v40 = vld [vmem:[#allocation2 + $0x58] sm:$0xff]
    %v41 = vld [vmem:[#allocation2 + $0x60] sm:$0xff]
    %v42 = vld [vmem:[#allocation2 + $0x68] sm:$0xff]
    %v43 = vld [vmem:[#allocation2 + $0x70] sm:$0xff]
    %v44 = vld [vmem:[#allocation2 + $0x78] sm:$0xff]
    %v45 = vld [vmem:[#allocation2 + $0x80] sm:$0xff]
    %v46 = vld [vmem:[#allocation2 + $0x88] sm:$0xff]
    %v47 = vld [vmem:[#allocation2 + $0x90] sm:$0xff]
    %v48 = vld [vmem:[#allocation2 + $0x98] sm:$0xff]
    %v49 = vld [vmem:[#allocation2 + $0xa0] sm:$0xff]
    %v50 = vld [vmem:[#allocation2 + $0xa8] sm:$0xff]
    %v51 = vld [vmem:[#allocation2 + $0xb0] sm:$0xff]
    %v52 = vld [vmem:[#allocation2 + $0xb8] sm:$0xff]
    %v53 = vld [vmem:[#allocation2 + $0xc0] sm:$0xff]
    %v54 = vld [vmem:[#allocation2 + $0xc8] sm:$0xff]
    %v55 = vld [vmem:[#allocation2 + $0xd0] sm:$0xff]
    %v56 = vld [vmem:[#allocation2 + $0xd8] sm:$0xff]
    %v57 = vld [vmem:[#allocation2 + $0xe0] sm:$0xff]
    %v58 = vld [vmem:[#allocation2 + $0xe8] sm:$0xff]
    %v59 = vld [vmem:[#allocation2 + $0xf0] sm:$0xff]
    %v60 = vld [vmem:[#allocation2 + $0xf8] sm:$0xff]
    %v61 = vld [vmem:[#allocation2 + $0x100] sm:$0xff]
    %v62 = vld [vmem:[#allocation2 + $0x108] sm:$0xff]
    %v63 = vld [vmem:[#allocation2 + $0x110] sm:$0xff]
    %v64 = vld [vmem:[#allocation2 + $0x118] sm:$0xff]
    %v65 = vld [vmem:[#allocation2 + $0x120] sm:$0xff]
    %v66 = vld [vmem:[#allocation2 + $0x128] sm:$0xff]
    %v67 = vld [vmem:[#allocation2 + $0x130] sm:$0xff]
    %v68 = vld [vmem:[#allocation2 + $0x138] sm:$0xff]
    %v69 = vld [vmem:[#allocation2 + $0x140] sm:$0xff]
    %v70 = vld [vmem:[#allocation2 + $0x148] sm:$0xff]
    %v71 = vld [vmem:[#allocation2 + $0x150] sm:$0xff]
    %v72 = vld [vmem:[#allocation2 + $0x158] sm:$0xff]
    %v73 = vld [vmem:[#allocation2 + $0x160] sm:$0xff]
    %v74 = vld [vmem:[#allocation2 + $0x168] sm:$0xff]
    %v75 = vld [vmem:[#allocation2 + $0x170] sm:$0xff]
    %v76 = vld [vmem:[#allocation2 + $0x178] sm:$0xff]
    %v77 = vld [vmem:[#allocation2 + $0x180] sm:$0xff]
    %v78 = vld [vmem:[#allocation2 + $0x188] sm:$0xff]
    %v79 = vld [vmem:[#allocation2 + $0x190] sm:$0xff]
    %v80 = vld [vmem:[#allocation2 + $0x198] sm:$0xff]
    %v81 = vld [vmem:[#allocation2 + $0x1a0] sm:$0xff]
    %v82 = vld [vmem:[#allocation2 + $0x1a8] sm:$0xff]
    %v83 = vld [vmem:[#allocation2 + $0x1b0] sm:$0xff]
    %v84 = vld [vmem:[#allocation2 + $0x1b8] sm:$0xff]
    %v85 = vld [vmem:[#allocation2 + $0x1c0] sm:$0xff]
    %v86 = vld [vmem:[#allocation2 + $0x1c8] sm:$0xff]
    %v87 = vld [vmem:[#allocation2 + $0x1d0] sm:$0xff]
    %v88 = vld [vmem:[#allocation2 + $0x1d8] sm:$0xff]
    %v89 = vld [vmem:[#allocation2 + $0x1e0] sm:$0xff]
    %v90 = vld [vmem:[#allocation2 + $0x1e8] sm:$0xff]
    %v91 = vld [vmem:[#allocation2 + $0x1f0] sm:$0xff]
    %v92 = vld [vmem:[#allocation2 + $0x1f8] sm:$0xff]
    %93 = vmatpush.msra.mxu0 %v89
    %94 = vmatpush.msra.mxu0 %v85
    %95 = vmatpush.msra.mxu0 %v81
    %96 = vmatpush.msra.mxu0 %v77
    %97 = vmatpush.msra.mxu0 %v73
    %98 = vmatpush.msra.mxu0 %v69
    %99 = vmatpush.msra.mxu0 %v65
    %100 = vmatpush.msra.mxu0 %v61
    %101 = vmatpush.msra.mxu0 %v57
    %102 = vmatpush.msra.mxu0 %v53
    %103 = vmatpush.msra.mxu0 %v49
    %104 = vmatpush.msra.mxu0 %v45
    %105 = vmatpush.msra.mxu0 %v41
    %106 = vmatpush.msra.mxu0 %v37
    %107 = vmatpush.msra.mxu0 %v33
    %108 = vmatpush.msra.mxu0 %v29
    %109 = vmatmul.f32.gmra.mxu0 %v27
    %v110 = vpop.f32.mrf.mxu0
    %v111 = vadd.f32 0.0, %v110
    %112 = vmatmul.f32.gmra.mxu0 %v28
    %v113 = vpop.f32.mrf.mxu0
    %v114 = vadd.f32 0.0, %v113
    %115 = vdwg.mxu0
    %116 = vmatpush.msra.mxu0 %v90
    %117 = vmatpush.msra.mxu0 %v86
    %118 = vmatpush.msra.mxu0 %v82
    %119 = vmatpush.msra.mxu0 %v78
    %120 = vmatpush.msra.mxu0 %v74
    %121 = vmatpush.msra.mxu0 %v70
    %122 = vmatpush.msra.mxu0 %v66
    %123 = vmatpush.msra.mxu0 %v62
    %124 = vmatpush.msra.mxu0 %v58
    %125 = vmatpush.msra.mxu0 %v54
    %126 = vmatpush.msra.mxu0 %v50
    %127 = vmatpush.msra.mxu0 %v46
    %128 = vmatpush.msra.mxu0 %v42
    %129 = vmatpush.msra.mxu0 %v38
    %130 = vmatpush.msra.mxu0 %v34
    %131 = vmatpush.msra.mxu0 %v30
    %132 = vmatmul.f32.gmra.mxu0 %v27
    %v133 = vpop.f32.mrf.mxu0
    %v134 = vadd.f32 0.0, %v133
    %135 = vmatmul.f32.gmra.mxu0 %v28
    %v136 = vpop.f32.mrf.mxu0
    %v137 = vadd.f32 0.0, %v136
    %138 = vdwg.mxu0
    %139 = vmatpush.msra.mxu0 %v91
    %140 = vmatpush.msra.mxu0 %v87
    %141 = vmatpush.msra.mxu0 %v83
    %142 = vmatpush.msra.mxu0 %v79
    %143 = vmatpush.msra.mxu0 %v75
    %144 = vmatpush.msra.mxu0 %v71
    %145 = vmatpush.msra.mxu0 %v67
    %146 = vmatpush.msra.mxu0 %v63
    %147 = vmatpush.msra.mxu0 %v59
    %148 = vmatpush.msra.mxu0 %v55
    %149 = vmatpush.msra.mxu0 %v51
    %150 = vmatpush.msra.mxu0 %v47
    %151 = vmatpush.msra.mxu0 %v43
    %152 = vmatpush.msra.mxu0 %v39
    %153 = vmatpush.msra.mxu0 %v35
    %154 = vmatpush.msra.mxu0 %v31
    %155 = vmatmul.f32.gmra.mxu0 %v27
    %v156 = vpop.f32.mrf.mxu0
    %v157 = vadd.f32 0.0, %v156
    %158 = vmatmul.f32.gmra.mxu0 %v28
    %v159 = vpop.f32.mrf.mxu0
    %v160 = vadd.f32 0.0, %v159
    %161 = vdwg.mxu0
    %162 = vmatpush.msra.mxu0 %v92
    %163 = vmatpush.msra.mxu0 %v88
    %164 = vmatpush.msra.mxu0 %v84
    %165 = vmatpush.msra.mxu0 %v80
    %166 = vmatpush.msra.mxu0 %v76
    %167 = vmatpush.msra.mxu0 %v72
    %168 = vmatpush.msra.mxu0 %v68
    %169 = vmatpush.msra.mxu0 %v64
    %170 = vmatpush.msra.mxu0 %v60
    %171 = vmatpush.msra.mxu0 %v56
    %172 = vmatpush.msra.mxu0 %v52
    %173 = vmatpush.msra.mxu0 %v48
    %174 = vmatpush.msra.mxu0 %v44
    %175 = vmatpush.msra.mxu0 %v40
    %176 = vmatpush.msra.mxu0 %v36
    %177 = vmatpush.msra.mxu0 %v32
    %178 = vmatmul.f32.gmra.mxu0 %v27
    %v179 = vpop.f32.mrf.mxu0
    %v180 = vadd.f32 0.0, %v179
    %181 = vmatmul.f32.gmra.mxu0 %v28
    %v182 = vpop.f32.mrf.mxu0
    %v183 = vadd.f32 0.0, %v182
    %184 = vdwg.mxu0
    %185 = vst [vmem:[%s2] sm:$0xff] %v111
    %186 = vst [vmem:[%s2 + $0x8] sm:$0xff] %v134
    %187 = vst [vmem:[%s2 + $0x10] sm:$0xff] %v157
    %188 = vst [vmem:[%s2 + $0x18] sm:$0xff] %v180
    %189 = vst [vmem:[%s2 + $0x20] sm:$0xff] %v114
    %190 = vst [vmem:[%s2 + $0x28] sm:$0xff] %v137
    %191 = vst [vmem:[%s2 + $0x30] sm:$0xff] %v160
    %192 = vst [vmem:[%s2 + $0x38] sm:$0xff] %v183
    // Predicated region
    $region14: #{nearest_upsample_2x.1} parent=1 // pred_check
      _
    $region15: #{nearest_upsample_2x.1} parent=1 // pred_check_branch
      %194 = sbr.rel (0) target = $region17
    $region16: #{nearest_upsample_2x.1} parent=1 // pred_region
      _
    $region17: #{nearest_upsample_2x.1} parent=1 // pred_fallthru
      _
    // Predicated region
    $region18: #{nearest_upsample_2x.1} parent=1 // pred_check
      _
    $region19: #{nearest_upsample_2x.1} parent=1 // pred_check_branch
      %196 = sbr.rel (0) target = $region21
    $region20: #{nearest_upsample_2x.1} parent=1 // pred_region
      _
    $region21: #{nearest_upsample_2x.1} parent=1 // pred_fallthru
      _
    %197 = vsyncpa [#allocation3], 1

</llo_original>
